<compile_context>
chip_gen: v7x
topology: tpu7x:2x2x1
jax: 0.10.0
libtpu: 0.0.40
codegen_flags: <defaults>
</compile_context>

<pallas_src>
import math
import numpy as np

import jax
import jax.numpy as jnp
from jax.experimental import pallas as pl
from jax.experimental.pallas import tpu as pltpu


# ----------------------------------------------------------------------------
# helpers (plain numpy / JAX glue)
# ----------------------------------------------------------------------------
def _bilinear_matrix(in_size: int, out_size: int) -> np.ndarray:
    """Row matrix reproducing torch.nn.Upsample(mode='bilinear',
    align_corners=False) along one axis:  out = W @ in."""
    W = np.zeros((out_size, in_size), dtype=np.float32)
    if in_size == out_size:
        np.fill_diagonal(W, 1.0)
        return W
    scale = in_size / out_size
    for d in range(out_size):
        src = scale * (d + 0.5) - 0.5
        src = max(src, 0.0)                      # torch clamps negative src to 0
        i0 = min(int(np.floor(src)), in_size - 1)
        i1 = min(i0 + 1, in_size - 1)
        l1 = src - i0
        W[d, i0] += 1.0 - l1
        W[d, i1] += l1
    return W


def _erf(x):
    # Abramowitz & Stegun 7.1.26, |error| < 1.5e-7 — exp + polynomial only, so
    # it is guaranteed to lower in Mosaic (exp hits the EUP slot, polynomial
    # is VPU filler under the MXU work).
    # TODO(synk): switch to lax.erf if/when the erf primitive is supported by
    # the TPU Pallas lowering.
    a1, a2, a3, a4, a5 = (0.254829592, -0.284496736, 1.421413741,
                          -1.453152027, 1.061405429)
    p = 0.3275911
    z = jnp.abs(x)
    t = 1.0 / (1.0 + p * z)
    poly = ((((a5 * t + a4) * t + a3) * t + a2) * t + a1) * t
    approx = 1.0 - poly * jnp.exp(-z * z)
    return jnp.where(x >= 0, approx, -approx)


def _gelu_exact(x):
    # torch nn.GELU() default (approximate='none'): 0.5*x*(1+erf(x/sqrt(2)))
    return 0.5 * x * (1.0 + _erf(x * (1.0 / math.sqrt(2.0))))


# ----------------------------------------------------------------------------
# Pallas kernel: one batch element per grid step, two MXU matmuls.
# ----------------------------------------------------------------------------
def _up_feature_kernel(x_ref, wh_ref, kwc_ref, b_ref, o_ref):
    # x_ref   : (1, H, W*Cin)       channel-last input plane (lane-fused W,Cin)
    # wh_ref  : (sH, H)             bilinear interp matrix along H
    # kwc_ref : (W*Cin, sW*Cout)    kron(Ww^T, conv_w^T): W-upsample + 1x1 conv
    # b_ref   : (1, sW*Cout)        bias tiled along sW
    # o_ref   : (1, sH, sW*Cout)    channel-last output (lane-dense fast axis)
    xs = x_ref[0]                                                       # (H, W*Cin)
    uh = jnp.dot(wh_ref[...], xs, preferred_element_type=jnp.float32)   # (sH, W*Cin)
    y = jnp.dot(uh, kwc_ref[...], preferred_element_type=jnp.float32)   # (sH, sW*Cout)
    y = y + b_ref[...]                        # broadcast bias row over sublanes
    o_ref[0] = _gelu_exact(y).astype(o_ref.dtype)


def up_feature_forward(x_nhwc, conv_w, conv_b, scale):
    """x_nhwc: (B, H, W, Cin) channel-last input (channel_last=True).
    conv_w: (Cout, Cin) 1x1-conv weight, conv_b: (Cout,).
    Returns NHWC output (B, sH, sW, Cout) (out_channel_last=True)."""
    B, H, W, Cin = x_nhwc.shape
    Cout = conv_w.shape[0]
    sH = int(round(H * scale))
    sW = int(round(W * scale))

    # Host-side interpolation / fused Kronecker operands (tiny at these shapes).
    wh = jnp.asarray(_bilinear_matrix(H, sH))                   # (sH, H)
    ww = _bilinear_matrix(W, sW)                                # (sW, W)
    # kron(Ww^T, I_Cin) @ kron(I_sW, conv_w^T) == kron(Ww^T, conv_w^T)
    kwc = jnp.kron(jnp.asarray(ww.T), conv_w.T)                 # (W*Cin, sW*Cout)
    brow = jnp.tile(conv_b, sW)[None, :]                        # (1, sW*Cout)

    # Free row-major reshape (no transpose, no extra HBM pass).
    x2 = x_nhwc.reshape(B, H, W * Cin)

    out = pl.pallas_call(
        _up_feature_kernel,
        out_shape=jax.ShapeDtypeStruct((B, sH, sW * Cout), jnp.float32),
        grid=(B,),
        in_specs=[
            pl.BlockSpec((1, H, W * Cin), lambda b: (b, 0, 0)),
            pl.BlockSpec((sH, H), lambda b: (0, 0)),
            pl.BlockSpec((W * Cin, sW * Cout), lambda b: (0, 0)),
            pl.BlockSpec((1, sW * Cout), lambda b: (0, 0)),
        ],
        out_specs=pl.BlockSpec((1, sH, sW * Cout), lambda b: (b, 0, 0)),
        compiler_params=pltpu.CompilerParams(
            # One batch element per step; "parallel" lets v7x's two TensorCores
            # split the batch.  Blocks are tiny so default scoped VMEM suffices
            # on v5e/v6e/v7x.
            dimension_semantics=("parallel",)),
    )(x2, wh, kwc, brow)

    # Free row-major reshape back to NHWC (B, sH, sW, Cout).
    return out.reshape(B, sH, sW, Cout)


# pure-JAX reference (sanity check only; uses the same erf approximation)
def _reference_forward(x_nhwc, conv_w, conv_b, scale):
    B, H, W, Cin = x_nhwc.shape
    sH = int(round(H * scale))
    sW = int(round(W * scale))
    wh = jnp.asarray(_bilinear_matrix(H, sH))        # (sH, H)
    ww = jnp.asarray(_bilinear_matrix(W, sW))        # (sW, W)
    up = jnp.einsum('sh,bhwc->bswc', wh, x_nhwc)     # H interp
    up = jnp.einsum('tw,bswc->bstc', ww, up)         # W interp
    y = jnp.einsum('dc,bstc->bstd', conv_w, up) + conv_b
    return _gelu_exact(y)


if __name__ == "__main__":
    # small shapes consistent with the module (channel_last in / out)
    B, inc, outc, H, W, scale = 2, 4, 8, 16, 16, 2
    sH, sW = int(H * scale), int(W * scale)

    key = jax.random.PRNGKey(0)
    kx, kw_, kb_ = jax.random.split(key, 3)

    # upsam conv params: weight (outc, inc, 1, 1) squeezed to (outc, inc)
    conv_w = jax.random.normal(kw_, (outc, inc), dtype=jnp.float32) * 0.1
    conv_b = jax.random.normal(kb_, (outc,), dtype=jnp.float32) * 0.1

    # channel-last input (channel_last=True in the module)
    x = jax.random.normal(kx, (B, H, W, inc), dtype=jnp.float32)

    y = up_feature_forward(x, conv_w, conv_b, scale)
    y = jax.block_until_ready(y)
    assert y.shape == (B, sH, sW, outc), y.shape

    y_ref = _reference_forward(x, conv_w, conv_b, scale)
    assert np.allclose(np.asarray(y), np.asarray(y_ref), atol=1e-4, rtol=1e-4)

    print("KERNEL_OK")
</pallas_src>

<mosaic_0001>
module attributes {stable_mosaic.version = 11 : i64} {
  func.func @_up_feature_kernel(%arg0: i32, %arg1: memref<1x16x64xf32, #tpu.memory_space<vmem>>, %arg2: memref<32x16xf32, #tpu.memory_space<vmem>>, %arg3: memref<64x256xf32, #tpu.memory_space<vmem>>, %arg4: memref<1x256xf32, #tpu.memory_space<vmem>>, %arg5: memref<1x32x256xf32, #tpu.memory_space<vmem>>) attributes {dimension_semantics = [#tpu.dimension_semantics<parallel>], iteration_bounds = array<i64: 2>, scalar_prefetch = 0 : i64, scratch_operands = 0 : i64, tpu.core_type = #tpu.core_type<tc>, window_params = [{transform_indices = @transform_0, window_bounds = array<i64: 1, 16, 64>}, {pipeline_mode = #tpu.pipeline_mode<synchronous>, transform_indices = @transform_1, window_bounds = array<i64: 32, 16>}, {pipeline_mode = #tpu.pipeline_mode<synchronous>, transform_indices = @transform_2, window_bounds = array<i64: 64, 256>}, {pipeline_mode = #tpu.pipeline_mode<synchronous>, transform_indices = @transform_3, window_bounds = array<i64: 1, 256>}, {transform_indices = @transform_4, window_bounds = array<i64: 1, 32, 256>}]} {
    %c0 = arith.constant 0 : index
    %c0_0 = arith.constant 0 : index
    %c0_1 = arith.constant 0 : index
    %0 = vector.load %arg1[%c0, %c0_0, %c0_1] : memref<1x16x64xf32, #tpu.memory_space<vmem>>, vector<1x16x64xf32>
    %1 = vector.shape_cast %0 : vector<1x16x64xf32> to vector<16x64xf32>
    %c0_2 = arith.constant 0 : index
    %c0_3 = arith.constant 0 : index
    %2 = vector.load %arg2[%c0_2, %c0_3] : memref<32x16xf32, #tpu.memory_space<vmem>>, vector<32x16xf32>
    %cst = arith.constant dense<0.000000e+00> : vector<32x64xf32>
    %3 = tpu.matmul %2, %1, %cst {dimension_numbers = #tpu.dot_dimension_numbers<[1], [0], [0], [1], [0, 0, 1, 1], [], []>} : vector<32x16xf32>, vector<16x64xf32>, vector<32x64xf32> -> vector<32x64xf32>
    %c0_4 = arith.constant 0 : index
    %c0_5 = arith.constant 0 : index
    %4 = vector.load %arg3[%c0_4, %c0_5] : memref<64x256xf32, #tpu.memory_space<vmem>>, vector<64x256xf32>
    %cst_6 = arith.constant dense<0.000000e+00> : vector<32x256xf32>
    %5 = tpu.matmul %3, %4, %cst_6 {dimension_numbers = #tpu.dot_dimension_numbers<[1], [0], [0], [1], [0, 0, 1, 1], [], []>} : vector<32x64xf32>, vector<64x256xf32>, vector<32x256xf32> -> vector<32x256xf32>
    %c0_7 = arith.constant 0 : index
    %c0_8 = arith.constant 0 : index
    %6 = vector.load %arg4[%c0_7, %c0_8] : memref<1x256xf32, #tpu.memory_space<vmem>>, vector<1x256xf32>
    %7 = vector.broadcast %6 : vector<1x256xf32> to vector<32x256xf32>
    %8 = arith.addf %5, %7 : vector<32x256xf32>
    %cst_9 = arith.constant 5.000000e-01 : f32
    %9 = vector.broadcast %cst_9 : f32 to vector<32x256xf32>
    %10 = arith.mulf %9, %8 : vector<32x256xf32>
    %cst_10 = arith.constant 0.707106769 : f32
    %11 = vector.broadcast %cst_10 : f32 to vector<32x256xf32>
    %12 = arith.mulf %8, %11 : vector<32x256xf32>
    %13 = math.absf %12 : vector<32x256xf32>
    %cst_11 = arith.constant 0.327591091 : f32
    %14 = vector.broadcast %cst_11 : f32 to vector<32x256xf32>
    %15 = arith.mulf %14, %13 : vector<32x256xf32>
    %cst_12 = arith.constant 1.000000e+00 : f32
    %16 = vector.broadcast %cst_12 : f32 to vector<32x256xf32>
    %17 = arith.addf %16, %15 : vector<32x256xf32>
    %cst_13 = arith.constant 1.000000e+00 : f32
    %18 = vector.broadcast %cst_13 : f32 to vector<32x256xf32>
    %19 = arith.divf %18, %17 : vector<32x256xf32>
    %cst_14 = arith.constant 1.06140542 : f32
    %20 = vector.broadcast %cst_14 : f32 to vector<32x256xf32>
    %21 = arith.mulf %20, %19 : vector<32x256xf32>
    %cst_15 = arith.constant -1.45315206 : f32
    %22 = vector.broadcast %cst_15 : f32 to vector<32x256xf32>
    %23 = arith.addf %21, %22 : vector<32x256xf32>
    %24 = arith.mulf %23, %19 : vector<32x256xf32>
    %cst_16 = arith.constant 1.42141378 : f32
    %25 = vector.broadcast %cst_16 : f32 to vector<32x256xf32>
    %26 = arith.addf %24, %25 : vector<32x256xf32>
    %27 = arith.mulf %26, %19 : vector<32x256xf32>
    %cst_17 = arith.constant -0.284496725 : f32
    %28 = vector.broadcast %cst_17 : f32 to vector<32x256xf32>
    %29 = arith.addf %27, %28 : vector<32x256xf32>
    %30 = arith.mulf %29, %19 : vector<32x256xf32>
    %cst_18 = arith.constant 0.254829586 : f32
    %31 = vector.broadcast %cst_18 : f32 to vector<32x256xf32>
    %32 = arith.addf %30, %31 : vector<32x256xf32>
    %33 = arith.mulf %32, %19 : vector<32x256xf32>
    %cst_19 = arith.constant 0.000000e+00 : f32
    %34 = vector.broadcast %cst_19 : f32 to vector<32x256xf32>
    %35 = arith.subf %34, %13 : vector<32x256xf32>
    %36 = arith.mulf %35, %13 : vector<32x256xf32>
    %37 = math.exp %36 : vector<32x256xf32>
    %38 = arith.mulf %33, %37 : vector<32x256xf32>
    %cst_20 = arith.constant 1.000000e+00 : f32
    %39 = vector.broadcast %cst_20 : f32 to vector<32x256xf32>
    %40 = arith.subf %39, %38 : vector<32x256xf32>
    %cst_21 = arith.constant 0.000000e+00 : f32
    %41 = vector.broadcast %cst_21 : f32 to vector<32x256xf32>
    %42 = arith.cmpf oge, %12, %41 : vector<32x256xf32>
    %cst_22 = arith.constant 0.000000e+00 : f32
    %43 = vector.broadcast %cst_22 : f32 to vector<32x256xf32>
    %44 = arith.subf %43, %40 : vector<32x256xf32>
    %45 = arith.select %42, %40, %44 : vector<32x256xi1>, vector<32x256xf32>
    %cst_23 = arith.constant 1.000000e+00 : f32
    %46 = vector.broadcast %cst_23 : f32 to vector<32x256xf32>
    %47 = arith.addf %46, %45 : vector<32x256xf32>
    %48 = arith.mulf %10, %47 : vector<32x256xf32>
    %c0_24 = arith.constant 0 : index
    %c0_25 = arith.constant 0 : index
    %c0_26 = arith.constant 0 : index
    %49 = vector.load %arg5[%c0_24, %c0_25, %c0_26] : memref<1x32x256xf32, #tpu.memory_space<vmem>>, vector<1x32x256xf32>
    %50 = vector.shape_cast %49 : vector<1x32x256xf32> to vector<32x256xf32>
    %51 = vector.shape_cast %48 : vector<32x256xf32> to vector<1x32x256xf32>
    tpu.vector_store %arg5[%c0_24, %c0_25, %c0_26], %51 {strides = array<i32>} : memref<1x32x256xf32, #tpu.memory_space<vmem>>, vector<1x32x256xf32>,
    return
  }
  func.func @transform_0(%arg0: i32) -> (i32, i32, i32) {
    %c0_i32 = arith.constant 0 : i32
    %c0_i32_0 = arith.constant 0 : i32
    %c0_i32_1 = arith.constant 0 : i32
    return %arg0, %c0_i32, %c0_i32_0 : i32, i32, i32
  }
  func.func @transform_1(%arg0: i32) -> (i32, i32) {
    %c0_i32 = arith.constant 0 : i32
    %c0_i32_0 = arith.constant 0 : i32
    %c0_i32_1 = arith.constant 0 : i32
    return %c0_i32, %c0_i32_0 : i32, i32
  }
  func.func @transform_2(%arg0: i32) -> (i32, i32) {
    %c0_i32 = arith.constant 0 : i32
    %c0_i32_0 = arith.constant 0 : i32
    %c0_i32_1 = arith.constant 0 : i32
    return %c0_i32, %c0_i32_0 : i32, i32
  }
  func.func @transform_3(%arg0: i32) -> (i32, i32) {
    %c0_i32 = arith.constant 0 : i32
    %c0_i32_0 = arith.constant 0 : i32
    %c0_i32_1 = arith.constant 0 : i32
    return %c0_i32, %c0_i32_0 : i32, i32
  }
  func.func @transform_4(%arg0: i32) -> (i32, i32, i32) {
    %c0_i32 = arith.constant 0 : i32
    %c0_i32_0 = arith.constant 0 : i32
    %c0_i32_1 = arith.constant 0 : i32
    return %arg0, %c0_i32, %c0_i32_0 : i32, i32, i32
  }
}

</mosaic_0001>

<llo_original>
// kernel: tpu_custom_call.1
$region0: #{tpu_custom_call.1}
  #allocation0 [shape = 'u32[]', space=smem, size = 0x4, offset = 0x4, fixed_abs, tag = 'smem constant byte address 0x4 - core index']
  #allocation1 [shape = 'u32[144,128]{1,0:T(1,128)}', space=vmem, size = 0x12000, scoped, tag = 'internal scratch']
  %s0 = inlined_call_operand.vmem [shape: f32[2,16,64], index: 0, kind: input, shape index: {}]
  %s1 = inlined_call_operand.vmem [shape: f32[32,16], index: 1, kind: input, shape index: {}]
  %s2 = inlined_call_operand.hbm [shape: f32[64,256], index: 2, kind: input, shape index: {}]
  %s3 = inlined_call_operand.vmem [shape: f32[1,256], index: 3, kind: input, shape index: {}]
  %s4 = inlined_call_operand.hbm [shape: f32[2,32,256], index: 4, kind: output, shape index: {}]
  %s5 = sld [smem:[#allocation0]]
  $region53: #{tpu_custom_call.1} parent=0
    _
  %s7 = ssub.s32 1, %s5
  %s8 = scalar_select 0, %s7, %s5
  $region1: #{tpu_custom_call.1} parent=0
    #allocation2 [shape = 'u8[65536]{0}', space=vmem, size = 0x10000, scoped, tag = 'input window, operand 2, single buffered']
    #allocation3 [shape = 's32[2]{0}', space=sflag, size = 0x8, scoped, tag = 'scoped memory for tpu_custom_call.1']
    #allocation4 [shape = 's32[2]{0}', space=sflag, size = 0x8, scoped, tag = 'scoped memory for tpu_custom_call.1']
    #allocation5 [shape = 'u8[65536]{0}', space=vmem, size = 0x10000, scoped, tag = 'output window, operand 0']
    %9 = vsyncpa [#allocation3], 0
    %10 = vsyncpa [#allocation4], 0
    %s11 = scalar_lea.sflag [#allocation4], 1
    %12 = vsyncpa %s11, 0
    loop: start=0, step=1, limit=4
    $region2: #{tpu_custom_call.1} parent=1 // loop_pre_header
      _
    $region3: #{tpu_custom_call.1} parent=1 // loop_header
      %s14 = sphi 0, %s18
      %p15 = scmp.ge.s32.totalorder %s14, 4
      %s24 = sphi 0, %s26
      %s27 = sphi 0, %s24
      %s28 = sphi 0, %s27
      %s44 = sphi 0, %s28
      %s48 = sphi 0, %s48
      %s50 = sphi 0, %s48
      %s51 = sphi 0, %s50
      %s65 = sphi 0, %s51
      %s69 = sphi 0, %s69
      %s71 = sphi 0, %s69
      %s72 = sphi 0, %s71
      %s86 = sphi 0, %s72
      %s90 = sphi 0, %s90
      %s92 = sphi 0, %s90
      %s93 = sphi 0, %s92
      %s107 = sphi 0, %s93
      %s113 = sphi 0, %s115
      %s116 = sphi 0, %s113
      %s117 = sphi 0, %s116
      %s133 = sphi 0, %s117
    $region4: #{tpu_custom_call.1} parent=1 // loop_header_branch
      %17 = sbr.rel (%p15) target = $region8
    $region5: #{tpu_custom_call.1} parent=1 // loop_body
      %s19 = ssub.s32 %s14, 1
      %s20 = ssub.s32 %s14, 2
      %s21 = sadd.s32 %s14, 1
      %s22 = ssub.s32 %s14, %s21
      %p23 = scmp.eq.s32.totalorder %s22, 0
      %s25 = sadd.s32 %s24, 1
      %s26 = scalar_select %p23, %s24, %s25
      %p29 = pneg %p23
      %p30 = scmp.eq.s32.totalorder %s14, 1
      %p31 = por %p29, %p30
      %p32 = scmp.ne.s32.totalorder %s24, %s27
      %p33 = scmp.eq.s32.totalorder %s14, 0
      %p34 = por %p32, %p33
      %p35 = scmp.ne.s32.totalorder %s24, %s27
      %p36 = scmp.eq.s32.totalorder %s19, 1
      %p37 = por %p35, %p36
      %p38 = scmp.ne.s32.totalorder %s27, %s28
      %p39 = scmp.eq.s32.totalorder %s19, 0
      %p40 = por %p38, %p39
      %p41 = scmp.ne.s32.totalorder %s27, %s28
      %p42 = scmp.eq.s32.totalorder %s20, 1
      %p43 = por %p41, %p42
      %p45 = scmp.ne.s32.totalorder %s28, %s44
      %p46 = scmp.eq.s32.totalorder %s20, 0
      %p47 = por %p45, %p46
      %s49 = sadd.s32 %s48, 1
      %p52 = scmp.eq.s32.totalorder %s14, 1
      %p53 = scmp.ne.s32.totalorder %s48, %s50
      %p54 = scmp.eq.s32.totalorder %s14, 0
      %p55 = por %p53, %p54
      %p56 = scmp.ne.s32.totalorder %s48, %s50
      %p57 = scmp.eq.s32.totalorder %s19, 1
      %p58 = por %p56, %p57
      %p59 = scmp.ne.s32.totalorder %s50, %s51
      %p60 = scmp.eq.s32.totalorder %s19, 0
      %p61 = por %p59, %p60
      %p62 = scmp.ne.s32.totalorder %s50, %s51
      %p63 = scmp.eq.s32.totalorder %s20, 1
      %p64 = por %p62, %p63
      %p66 = scmp.ne.s32.totalorder %s51, %s65
      %p67 = scmp.eq.s32.totalorder %s20, 0
      %p68 = por %p66, %p67
      %s70 = sadd.s32 %s69, 1
      %p73 = scmp.eq.s32.totalorder %s14, 1
      %p74 = scmp.ne.s32.totalorder %s69, %s71
      %p75 = scmp.eq.s32.totalorder %s14, 0
      %p76 = por %p74, %p75
      %p77 = scmp.ne.s32.totalorder %s69, %s71
      %p78 = scmp.eq.s32.totalorder %s19, 1
      %p79 = por %p77, %p78
      %p80 = scmp.ne.s32.totalorder %s71, %s72
      %p81 = scmp.eq.s32.totalorder %s19, 0
      %p82 = por %p80, %p81
      %p83 = scmp.ne.s32.totalorder %s71, %s72
      %p84 = scmp.eq.s32.totalorder %s20, 1
      %p85 = por %p83, %p84
      %p87 = scmp.ne.s32.totalorder %s72, %s86
      %p88 = scmp.eq.s32.totalorder %s20, 0
      %p89 = por %p87, %p88
      %s91 = sadd.s32 %s90, 1
      %p94 = scmp.eq.s32.totalorder %s14, 1
      %p95 = scmp.ne.s32.totalorder %s90, %s92
      %p96 = scmp.eq.s32.totalorder %s14, 0
      %p97 = por %p95, %p96
      %p98 = scmp.ne.s32.totalorder %s90, %s92
      %p99 = scmp.eq.s32.totalorder %s19, 1
      %p100 = por %p98, %p99
      %p101 = scmp.ne.s32.totalorder %s92, %s93
      %p102 = scmp.eq.s32.totalorder %s19, 0
      %p103 = por %p101, %p102
      %p104 = scmp.ne.s32.totalorder %s92, %s93
      %p105 = scmp.eq.s32.totalorder %s20, 1
      %p106 = por %p104, %p105
      %p108 = scmp.ne.s32.totalorder %s93, %s107
      %p109 = scmp.eq.s32.totalorder %s20, 0
      %p110 = por %p108, %p109
      %s111 = ssub.s32 %s14, %s21
      %p112 = scmp.eq.s32.totalorder %s111, 0
      %s114 = sadd.s32 %s113, 1
      %s115 = scalar_select %p112, %s113, %s114
      %p118 = pneg %p112
      %p119 = scmp.eq.s32.totalorder %s14, 1
      %p120 = por %p118, %p119
      %p121 = scmp.ne.s32.totalorder %s113, %s116
      %p122 = scmp.eq.s32.totalorder %s14, 0
      %p123 = por %p121, %p122
      %p124 = scmp.ne.s32.totalorder %s113, %s116
      %p125 = scmp.eq.s32.totalorder %s19, 1
      %p126 = por %p124, %p125
      %p127 = scmp.ne.s32.totalorder %s116, %s117
      %p128 = scmp.eq.s32.totalorder %s19, 0
      %p129 = por %p127, %p128
      %p130 = scmp.ne.s32.totalorder %s116, %s117
      %p131 = scmp.eq.s32.totalorder %s20, 1
      %p132 = por %p130, %p131
      %p134 = scmp.ne.s32.totalorder %s117, %s133
      %p135 = scmp.eq.s32.totalorder %s20, 0
      %p136 = por %p134, %p135
      %p137 = scmp.le.s32.totalorder 1, %s14
      %p138 = scmp.lt.s32.totalorder %s14, 3
      %p139 = pnand %p137, %p138
      %p140 = pneg %p139
      // Predicated region
      $region9: #{tpu_custom_call.1} parent=5 // pred_check
        _
      $region10: #{tpu_custom_call.1} parent=5 // pred_check_branch
        %142 = sbr.rel (%p139) target = $region12
      $region11: #{tpu_custom_call.1} parent=5 // pred_region
        %s143 = ssub.s32 %s14, 1
        // Predicated region
        $region13: #{tpu_custom_call.1} parent=11 // pred_check
          %p144 = pneg %p61
        $region14: #{tpu_custom_call.1} parent=11 // pred_check_branch
          %146 = sbr.rel (%p144) target = $region16
        $region15: #{tpu_custom_call.1} parent=11 // pred_region
          _
        $region16: #{tpu_custom_call.1} parent=11 // pred_fallthru
          _
        // Predicated region
        $region17: #{tpu_custom_call.1} parent=11 // pred_check
          %p147 = pneg %p82
        $region18: #{tpu_custom_call.1} parent=11 // pred_check_branch
          %149 = sbr.rel (%p147) target = $region20
        $region19: #{tpu_custom_call.1} parent=11 // pred_region
          %s151 = ssub.s32 2048, 2048
          %152 = vsyncadd [#allocation3], %s151
          %s153 = sshll.u32 [#allocation2], 4
          %s154 = int_to_ptr.vmem [resolvable:$true] %s153
          %159 = dma.hbm_to_vmem [thread:$0]  %s2, 2048, %s154, [#allocation3], 256, 256, 16
        $region20: #{tpu_custom_call.1} parent=11 // pred_fallthru
          _
        // Predicated region
        $region21: #{tpu_custom_call.1} parent=11 // pred_check
          %p160 = pneg %p103
        $region22: #{tpu_custom_call.1} parent=11 // pred_check_branch
          %162 = sbr.rel (%p160) target = $region24
        $region23: #{tpu_custom_call.1} parent=11 // pred_region
          _
        $region24: #{tpu_custom_call.1} parent=11 // pred_fallthru
          _
      $region12: #{tpu_custom_call.1} parent=5 // pred_fallthru
        _
      %p163 = scmp.lt.s32.totalorder %s14, 2
      // Predicated region
      $region25: #{tpu_custom_call.1} parent=5 // pred_check
        %p164 = pneg %p163
      $region26: #{tpu_custom_call.1} parent=5 // pred_check_branch
        %166 = sbr.rel (%p164) target = $region28
      $region27: #{tpu_custom_call.1} parent=5 // pred_region
        // Predicated region
        $region29: #{tpu_custom_call.1} parent=27 // pred_check
          %p167 = pneg %p34
        $region30: #{tpu_custom_call.1} parent=27 // pred_check_branch
          %169 = sbr.rel (%p167) target = $region32
        $region31: #{tpu_custom_call.1} parent=27 // pred_region
          %p170 = scmp.lt.s32.totalorder %s14, 1
          %s171 = scalar_select %p170, %s14, 1
          %s172 = smul.addr %s171, 2
          %s173 = smul.addr %s172, 8
          %s174 = scalar_lea.vmem %s0, %s173
        $region32: #{tpu_custom_call.1} parent=27 // pred_fallthru
          _
      $region28: #{tpu_custom_call.1} parent=5 // pred_fallthru
        _
      %p175 = scmp.le.s32.totalorder 1, %s14
      %p176 = scmp.lt.s32.totalorder %s14, 3
      %p177 = pnand %p175, %p176
      %p178 = pneg %p177
      // Predicated region
      $region33: #{tpu_custom_call.1} parent=5 // pred_check
        _
      $region34: #{tpu_custom_call.1} parent=5 // pred_check_branch
        %180 = sbr.rel (%p177) target = $region36
      $region35: #{tpu_custom_call.1} parent=5 // pred_region
        %s181 = ssub.s32 %s14, 1
        // Predicated region
        $region37: #{tpu_custom_call.1} parent=35 // pred_check
          %p182 = pneg %p82
        $region38: #{tpu_custom_call.1} parent=35 // pred_check_branch
          %184 = sbr.rel (%p182) target = $region40
        $region39: #{tpu_custom_call.1} parent=35 // pred_region
          %185 = dma.done [#allocation3], 2048
        $region40: #{tpu_custom_call.1} parent=35 // pred_fallthru
          _
        %p186 = scmp.lt.s32.totalorder %s19, 1
        %s187 = scalar_select %p186, %s19, 1
        %s188 = smul.addr %s187, 2
        %s189 = smul.addr %s188, 8
        %s190 = scalar_lea.vmem %s0, %s189
        %p191 = pneg %p40
        %p192 = pneg %p37
        %p193 = pneg %p61
        %p194 = pneg %p58
        %p195 = pneg %p82
        %p196 = pneg %p79
        %p197 = pneg %p103
        %p198 = pneg %p100
        %p199 = pneg %p129
        %p200 = pneg %p126
        %s201 = sand.u32 %s116, 1
        %s202 = scalar_lea.sflag [#allocation4], %s201
        %s203 = sand.u32 %s116, 1
        %s204 = smul.addr %s203, 64
        %s205 = scalar_lea.vmem [#allocation5], %s204
        %p206 = scmp.lt.s32.totalorder %s19, 1
        %s207 = scalar_select %p206, %s19, 1
        %s208 = smul.addr %s207, 2
        %s209 = smul.addr %s208, 8
        %s210 = scalar_lea.vmem %s0, %s209
        %v211 = vld [vmem:[%s210] sm:$0xff]
        %v212 = vld [vmem:[%s210 + $0x8] sm:$0xff]
        %v213 = vld [vmem:[%s1] sm:$0xff]
        %v214 = vld [vmem:[%s1 + $0x8] sm:$0xff]
        %v215 = vld [vmem:[%s1 + $0x10] sm:$0xff]
        %v216 = vld [vmem:[%s1 + $0x18] sm:$0xff]
        %vm217 = vcmask 130048
        %v219 = vsel %vm217, %v213, 0
        %v222 = vsel %vm217, %v214, 0
        %v225 = vsel %vm217, %v215, 0
        %v228 = vsel %vm217, %v216, 0
        %230 = vmatprep.subr.mxu0 0.0
        %231 = vmatpush1.msra.mxu0 %v211
        %232 = vmatprep.subr.mxu0 0.0
        %233 = vmatpush1.msra.mxu0 %v212
        %234 = vmatprep.subr.mxu0 0.0
        %235 = vmatpush1.msra.mxu0 0.0
        %236 = vmatprep.subr.mxu0 0.0
        %237 = vmatpush1.msra.mxu0 0.0
        %238 = vmatprep.subr.mxu0 0.0
        %239 = vmatpush1.msra.mxu0 0.0
        %240 = vmatprep.subr.mxu0 0.0
        %241 = vmatpush1.msra.mxu0 0.0
        %242 = vmatprep.subr.mxu0 0.0
        %243 = vmatpush1.msra.mxu0 0.0
        %244 = vmatprep.subr.mxu0 0.0
        %245 = vmatpush1.msra.mxu0 0.0
        %246 = vmatprep.subr.mxu0 0.0
        %247 = vmatpush1.msra.mxu0 0.0
        %248 = vmatprep.subr.mxu0 0.0
        %249 = vmatpush1.msra.mxu0 0.0
        %250 = vmatprep.subr.mxu0 0.0
        %251 = vmatpush1.msra.mxu0 0.0
        %252 = vmatprep.subr.mxu0 0.0
        %253 = vmatpush1.msra.mxu0 0.0
        %254 = vmatprep.subr.mxu0 0.0
        %255 = vmatpush1.msra.mxu0 0.0
        %256 = vmatprep.subr.mxu0 0.0
        %257 = vmatpush1.msra.mxu0 0.0
        %258 = vmatprep.subr.mxu0 0.0
        %259 = vmatpush1.msra.mxu0 0.0
        %260 = vmatprep.subr.mxu0 0.0
        %261 = vmatpush1.msra.mxu0 0.0
        %262 = vmatprep.subr.mxu0 0.0
        %263 = vmatpush1.msra.mxu0 0.0
        %264 = vmatprep.subr.mxu0 0.0
        %265 = vmatpush1.msra.mxu0 0.0
        %266 = vmatprep.subr.mxu0 0.0
        %267 = vmatpush1.msra.mxu0 0.0
        %268 = vmatprep.subr.mxu0 0.0
        %269 = vmatpush1.msra.mxu0 0.0
        %270 = vmatprep.subr.mxu0 0.0
        %271 = vmatpush1.msra.mxu0 0.0
        %272 = vmatprep.subr.mxu0 0.0
        %273 = vmatpush1.msra.mxu0 0.0
        %274 = vmatprep.subr.mxu0 0.0
        %275 = vmatpush1.msra.mxu0 0.0
        %276 = vmatprep.subr.mxu0 0.0
        %277 = vmatpush1.msra.mxu0 0.0
        %278 = vmatprep.subr.mxu0 0.0
        %279 = vmatpush1.msra.mxu0 0.0
        %280 = vmatprep.subr.mxu0 0.0
        %281 = vmatpush1.msra.mxu0 0.0
        %282 = vmatprep.subr.mxu0 0.0
        %283 = vmatpush1.msra.mxu0 0.0
        %284 = vmatprep.subr.mxu0 0.0
        %285 = vmatpush1.msra.mxu0 0.0
        %286 = vmatprep.subr.mxu0 0.0
        %287 = vmatpush1.msra.mxu0 0.0
        %288 = vmatprep.subr.mxu0 0.0
        %289 = vmatpush1.msra.mxu0 0.0
        %290 = vmatprep.subr.mxu0 0.0
        %291 = vmatpush1.msra.mxu0 0.0
        %292 = vmatprep.subr.mxu0 0.0
        %293 = vmatpush1.msra.mxu0 0.0
        %294 = vmatprep.mubr.f32.mxu0 0.0
        %295 = vmatmul.mubr.f32.gmra.mrb[0].mxu0 %v219
        %v296 = vpop.f32.mrb[0].mxu0
        %v297 = vadd.f32 0.0, %v296
        %v298 = vpop.f32.mrb[0].mxu0
        %299 = vmatprep.mubr.f32.mxu0 0.0
        %300 = vmatmul.mubr.f32.gmra.mrb[0].mxu0 %v222
        %v301 = vpop.f32.mrb[0].mxu0
        %v302 = vadd.f32 0.0, %v301
        %v303 = vpop.f32.mrb[0].mxu0
        %304 = vmatprep.mubr.f32.mxu0 0.0
        %305 = vmatmul.mubr.f32.gmra.mrb[0].mxu0 %v225
        %v306 = vpop.f32.mrb[0].mxu0
        %v307 = vadd.f32 0.0, %v306
        %v308 = vpop.f32.mrb[0].mxu0
        %309 = vmatprep.mubr.f32.mxu0 0.0
        %310 = vmatmul.mubr.f32.gmra.mrb[0].mxu0 %v228
        %v311 = vpop.f32.mrb[0].mxu0
        %v312 = vadd.f32 0.0, %v311
        %v313 = vpop.f32.mrb[0].mxu0
        %314 = vdwg.mxu0
        %v315 = vld [vmem:[#allocation2] sm:$0xff]
        %v316 = vld [vmem:[#allocation2 + $0x8] sm:$0xff]
        %v317 = vld [vmem:[#allocation2 + $0x10] sm:$0xff]
        %v318 = vld [vmem:[#allocation2 + $0x18] sm:$0xff]
        %v319 = vld [vmem:[#allocation2 + $0x20] sm:$0xff]
        %v320 = vld [vmem:[#allocation2 + $0x28] sm:$0xff]
        %v321 = vld [vmem:[#allocation2 + $0x30] sm:$0xff]
        %v322 = vld [vmem:[#allocation2 + $0x38] sm:$0xff]
        %v323 = vld [vmem:[#allocation2 + $0x40] sm:$0xff]
        %v324 = vld [vmem:[#allocation2 + $0x48] sm:$0xff]
        %v325 = vld [vmem:[#allocation2 + $0x50] sm:$0xff]
        %v326 = vld [vmem:[#allocation2 + $0x58] sm:$0xff]
        %v327 = vld [vmem:[#allocation2 + $0x60] sm:$0xff]
        %v328 = vld [vmem:[#allocation2 + $0x68] sm:$0xff]
        %v329 = vld [vmem:[#allocation2 + $0x70] sm:$0xff]
        %v330 = vld [vmem:[#allocation2 + $0x78] sm:$0xff]
        %v331 = vld [vmem:[%s3] sm:$0x3]
        %v333 = vlaneseq
        %v334 = vshrl.u32 %v333, 7
        %v335 = vsub.s32 0, %v334
        %v336 = vrot.slane %v331, %v335
        %v337 = vlaneseq
        %v338 = vshrl.u32 %v337, 7
        %v339 = vsub.s32 1, %v338
        %v340 = vrot.slane %v331, %v339
        %vm343 = vcmask 523264
        %v345 = vsel %vm343, %v297, 0
        %v348 = vsel %vm343, %v302, 0
        %v351 = vsel %vm343, %v307, 0
        %v354 = vsel %vm343, %v312, 0
        %356 = vmatprep.subr.mxu0 %v316
        %357 = vmatpush1.msra.mxu0 %v315
        %358 = vmatprep.subr.mxu0 %v318
        %359 = vmatpush1.msra.mxu0 %v317
        %360 = vmatprep.subr.mxu0 %v320
        %361 = vmatpush1.msra.mxu0 %v319
        %362 = vmatprep.subr.mxu0 %v322
        %363 = vmatpush1.msra.mxu0 %v321
        %364 = vmatprep.subr.mxu0 %v324
        %365 = vmatpush1.msra.mxu0 %v323
        %366 = vmatprep.subr.mxu0 %v326
        %367 = vmatpush1.msra.mxu0 %v325
        %368 = vmatprep.subr.mxu0 %v328
        %369 = vmatpush1.msra.mxu0 %v327
        %370 = vmatprep.subr.mxu0 %v330
        %371 = vmatpush1.msra.mxu0 %v329
        %372 = vmatprep.subr.mxu0 0.0
        %373 = vmatpush1.msra.mxu0 0.0
        %374 = vmatprep.subr.mxu0 0.0
        %375 = vmatpush1.msra.mxu0 0.0
        %376 = vmatprep.subr.mxu0 0.0
        %377 = vmatpush1.msra.mxu0 0.0
        %378 = vmatprep.subr.mxu0 0.0
        %379 = vmatpush1.msra.mxu0 0.0
        %380 = vmatprep.subr.mxu0 0.0
        %381 = vmatpush1.msra.mxu0 0.0
        %382 = vmatprep.subr.mxu0 0.0
        %383 = vmatpush1.msra.mxu0 0.0
        %384 = vmatprep.subr.mxu0 0.0
        %385 = vmatpush1.msra.mxu0 0.0
        %386 = vmatprep.subr.mxu0 0.0
        %387 = vmatpush1.msra.mxu0 0.0
        %388 = vmatprep.subr.mxu0 0.0
        %389 = vmatpush1.msra.mxu0 0.0
        %390 = vmatprep.subr.mxu0 0.0
        %391 = vmatpush1.msra.mxu0 0.0
        %392 = vmatprep.subr.mxu0 0.0
        %393 = vmatpush1.msra.mxu0 0.0
        %394 = vmatprep.subr.mxu0 0.0
        %395 = vmatpush1.msra.mxu0 0.0
        %396 = vmatprep.subr.mxu0 0.0
        %397 = vmatpush1.msra.mxu0 0.0
        %398 = vmatprep.subr.mxu0 0.0
        %399 = vmatpush1.msra.mxu0 0.0
        %400 = vmatprep.subr.mxu0 0.0
        %401 = vmatpush1.msra.mxu0 0.0
        %402 = vmatprep.subr.mxu0 0.0
        %403 = vmatpush1.msra.mxu0 0.0
        %404 = vmatprep.subr.mxu0 0.0
        %405 = vmatpush1.msra.mxu0 0.0
        %406 = vmatprep.subr.mxu0 0.0
        %407 = vmatpush1.msra.mxu0 0.0
        %408 = vmatprep.subr.mxu0 0.0
        %409 = vmatpush1.msra.mxu0 0.0
        %410 = vmatprep.subr.mxu0 0.0
        %411 = vmatpush1.msra.mxu0 0.0
        %412 = vmatprep.subr.mxu0 0.0
        %413 = vmatpush1.msra.mxu0 0.0
        %414 = vmatprep.subr.mxu0 0.0
        %415 = vmatpush1.msra.mxu0 0.0
        %416 = vmatprep.subr.mxu0 0.0
        %417 = vmatpush1.msra.mxu0 0.0
        %418 = vmatprep.subr.mxu0 0.0
        %419 = vmatpush1.msra.mxu0 0.0
        %420 = vmatprep.mubr.f32.mxu0 0.0
        %421 = vmatmul.mubr.f32.gmra.mrb[0].mxu0 %v345
        %v422 = vpop.f32.mrb[0].mxu0
        %v423 = vadd.f32 %v336, %v422
        %v424 = vpop.f32.mrb[0].mxu0
        %v425 = vadd.f32 %v340, %v424
        %426 = vmatprep.mubr.f32.mxu0 0.0
        %427 = vmatmul.mubr.f32.gmra.mrb[0].mxu0 %v348
        %v428 = vpop.f32.mrb[0].mxu0
        %v429 = vadd.f32 %v336, %v428
        %v430 = vpop.f32.mrb[0].mxu0
        %v431 = vadd.f32 %v340, %v430
        %432 = vmatprep.mubr.f32.mxu0 0.0
        %433 = vmatmul.mubr.f32.gmra.mrb[0].mxu0 %v351
        %v434 = vpop.f32.mrb[0].mxu0
        %v435 = vadd.f32 %v336, %v434
        %v436 = vpop.f32.mrb[0].mxu0
        %v437 = vadd.f32 %v340, %v436
        %438 = vmatprep.mubr.f32.mxu0 0.0
        %439 = vmatmul.mubr.f32.gmra.mrb[0].mxu0 %v354
        %v440 = vpop.f32.mrb[0].mxu0
        %v441 = vadd.f32 %v336, %v440
        %v442 = vpop.f32.mrb[0].mxu0
        %v443 = vadd.f32 %v340, %v442
        %444 = vdwg.mxu0
        %v445 = vmul.f32 %v423, 0.5
        %v446 = vmul.f32 %v425, 0.5
        %v447 = vmul.f32 %v429, 0.5
        %v448 = vmul.f32 %v431, 0.5
        %v449 = vmul.f32 %v435, 0.5
        %v450 = vmul.f32 %v437, 0.5
        %v451 = vmul.f32 %v441, 0.5
        %v452 = vmul.f32 %v443, 0.5
        %v453 = vmul.f32 %v423, 0.70710677
        %v454 = vmul.f32 %v425, 0.70710677
        %v455 = vmul.f32 %v429, 0.70710677
        %v456 = vmul.f32 %v431, 0.70710677
        %v457 = vmul.f32 %v435, 0.70710677
        %v458 = vmul.f32 %v437, 0.70710677
        %v459 = vmul.f32 %v441, 0.70710677
        %v460 = vmul.f32 %v443, 0.70710677
        %v461 = vand.u32 2147483647, %v453
        %v462 = vand.u32 2147483647, %v454
        %v463 = vand.u32 2147483647, %v455
        %v464 = vand.u32 2147483647, %v456
        %v465 = vand.u32 2147483647, %v457
        %v466 = vand.u32 2147483647, %v458
        %v467 = vand.u32 2147483647, %v459
        %v468 = vand.u32 2147483647, %v460
        %v469 = vmul.f32 %v461, 0.3275911
        %v470 = vmul.f32 %v462, 0.3275911
        %v471 = vmul.f32 %v463, 0.3275911
        %v472 = vmul.f32 %v464, 0.3275911
        %v473 = vmul.f32 %v465, 0.3275911
        %v474 = vmul.f32 %v466, 0.3275911
        %v475 = vmul.f32 %v467, 0.3275911
        %v476 = vmul.f32 %v468, 0.3275911
        %v477 = vadd.f32 %v469, 1.0
        %v478 = vadd.f32 %v470, 1.0
        %v479 = vadd.f32 %v471, 1.0
        %v480 = vadd.f32 %v472, 1.0
        %v481 = vadd.f32 %v473, 1.0
        %v482 = vadd.f32 %v474, 1.0
        %v483 = vadd.f32 %v475, 1.0
        %v484 = vadd.f32 %v476, 1.0
        %v485 = vrcp.pop %v477
        %v486 = vmul.f32 1.0, %v485
        %v487 = vrcp.pop %v478
        %v488 = vmul.f32 1.0, %v487
        %v489 = vrcp.pop %v479
        %v490 = vmul.f32 1.0, %v489
        %v491 = vrcp.pop %v480
        %v492 = vmul.f32 1.0, %v491
        %v493 = vrcp.pop %v481
        %v494 = vmul.f32 1.0, %v493
        %v495 = vrcp.pop %v482
        %v496 = vmul.f32 1.0, %v495
        %v497 = vrcp.pop %v483
        %v498 = vmul.f32 1.0, %v497
        %v499 = vrcp.pop %v484
        %v500 = vmul.f32 1.0, %v499
        %v501 = vmul.f32 %v486, 1.0614054
        %v502 = vmul.f32 %v488, 1.0614054
        %v503 = vmul.f32 %v490, 1.0614054
        %v504 = vmul.f32 %v492, 1.0614054
        %v505 = vmul.f32 %v494, 1.0614054
        %v506 = vmul.f32 %v496, 1.0614054
        %v507 = vmul.f32 %v498, 1.0614054
        %v508 = vmul.f32 %v500, 1.0614054
        %v509 = vadd.f32 %v501, -1.4531521
        %v510 = vadd.f32 %v502, -1.4531521
        %v511 = vadd.f32 %v503, -1.4531521
        %v512 = vadd.f32 %v504, -1.4531521
        %v513 = vadd.f32 %v505, -1.4531521
        %v514 = vadd.f32 %v506, -1.4531521
        %v515 = vadd.f32 %v507, -1.4531521
        %v516 = vadd.f32 %v508, -1.4531521
        %v517 = vmul.f32 %v509, %v486
        %v518 = vmul.f32 %v510, %v488
        %v519 = vmul.f32 %v511, %v490
        %v520 = vmul.f32 %v512, %v492
        %v521 = vmul.f32 %v513, %v494
        %v522 = vmul.f32 %v514, %v496
        %v523 = vmul.f32 %v515, %v498
        %v524 = vmul.f32 %v516, %v500
        %v525 = vadd.f32 %v517, 1.4214138
        %v526 = vadd.f32 %v518, 1.4214138
        %v527 = vadd.f32 %v519, 1.4214138
        %v528 = vadd.f32 %v520, 1.4214138
        %v529 = vadd.f32 %v521, 1.4214138
        %v530 = vadd.f32 %v522, 1.4214138
        %v531 = vadd.f32 %v523, 1.4214138
        %v532 = vadd.f32 %v524, 1.4214138
        %v533 = vmul.f32 %v525, %v486
        %v534 = vmul.f32 %v526, %v488
        %v535 = vmul.f32 %v527, %v490
        %v536 = vmul.f32 %v528, %v492
        %v537 = vmul.f32 %v529, %v494
        %v538 = vmul.f32 %v530, %v496
        %v539 = vmul.f32 %v531, %v498
        %v540 = vmul.f32 %v532, %v500
        %v541 = vadd.f32 %v533, -0.28449672
        %v542 = vadd.f32 %v534, -0.28449672
        %v543 = vadd.f32 %v535, -0.28449672
        %v544 = vadd.f32 %v536, -0.28449672
        %v545 = vadd.f32 %v537, -0.28449672
        %v546 = vadd.f32 %v538, -0.28449672
        %v547 = vadd.f32 %v539, -0.28449672
        %v548 = vadd.f32 %v540, -0.28449672
        %v549 = vmul.f32 %v541, %v486
        %v550 = vmul.f32 %v542, %v488
        %v551 = vmul.f32 %v543, %v490
        %v552 = vmul.f32 %v544, %v492
        %v553 = vmul.f32 %v545, %v494
        %v554 = vmul.f32 %v546, %v496
        %v555 = vmul.f32 %v547, %v498
        %v556 = vmul.f32 %v548, %v500
        %v557 = vadd.f32 %v549, 0.2548296
        %v558 = vadd.f32 %v550, 0.2548296
        %v559 = vadd.f32 %v551, 0.2548296
        %v560 = vadd.f32 %v552, 0.2548296
        %v561 = vadd.f32 %v553, 0.2548296
        %v562 = vadd.f32 %v554, 0.2548296
        %v563 = vadd.f32 %v555, 0.2548296
        %v564 = vadd.f32 %v556, 0.2548296
        %v565 = vmul.f32 %v557, %v486
        %v566 = vmul.f32 %v558, %v488
        %v567 = vmul.f32 %v559, %v490
        %v568 = vmul.f32 %v560, %v492
        %v569 = vmul.f32 %v561, %v494
        %v570 = vmul.f32 %v562, %v496
        %v571 = vmul.f32 %v563, %v498
        %v572 = vmul.f32 %v564, %v500
        %v573 = vsub.f32 0.0, %v461
        %v574 = vsub.f32 0.0, %v462
        %v575 = vsub.f32 0.0, %v463
        %v576 = vsub.f32 0.0, %v464
        %v577 = vsub.f32 0.0, %v465
        %v578 = vsub.f32 0.0, %v466
        %v579 = vsub.f32 0.0, %v467
        %v580 = vsub.f32 0.0, %v468
        %v581 = vmul.f32 %v573, %v461
        %v582 = vmul.f32 %v574, %v462
        %v583 = vmul.f32 %v575, %v463
        %v584 = vmul.f32 %v576, %v464
        %v585 = vmul.f32 %v577, %v465
        %v586 = vmul.f32 %v578, %v466
        %v587 = vmul.f32 %v579, %v467
        %v588 = vmul.f32 %v580, %v468
        %v589 = vmul.f32 %v581, 1.442695
        %v590 = vpow.pop %v589
        %v591 = vmul.f32 %v582, 1.442695
        %v592 = vpow.pop %v591
        %v593 = vmul.f32 %v583, 1.442695
        %v594 = vpow.pop %v593
        %v595 = vmul.f32 %v584, 1.442695
        %v596 = vpow.pop %v595
        %v597 = vmul.f32 %v585, 1.442695
        %v598 = vpow.pop %v597
        %v599 = vmul.f32 %v586, 1.442695
        %v600 = vpow.pop %v599
        %v601 = vmul.f32 %v587, 1.442695
        %v602 = vpow.pop %v601
        %v603 = vmul.f32 %v588, 1.442695
        %v604 = vpow.pop %v603
        %v605 = vmul.f32 %v565, %v590
        %v606 = vmul.f32 %v566, %v592
        %v607 = vmul.f32 %v567, %v594
        %v608 = vmul.f32 %v568, %v596
        %v609 = vmul.f32 %v569, %v598
        %v610 = vmul.f32 %v570, %v600
        %v611 = vmul.f32 %v571, %v602
        %v612 = vmul.f32 %v572, %v604
        %v613 = vsub.f32 1.0, %v605
        %v614 = vsub.f32 1.0, %v606
        %v615 = vsub.f32 1.0, %v607
        %v616 = vsub.f32 1.0, %v608
        %v617 = vsub.f32 1.0, %v609
        %v618 = vsub.f32 1.0, %v610
        %v619 = vsub.f32 1.0, %v611
        %v620 = vsub.f32 1.0, %v612
        %vm621 = vcmp.ge.f32.partialorder %v453, 0.0
        %vm622 = vcmp.ge.f32.partialorder %v454, 0.0
        %vm623 = vcmp.ge.f32.partialorder %v455, 0.0
        %vm624 = vcmp.ge.f32.partialorder %v456, 0.0
        %vm625 = vcmp.ge.f32.partialorder %v457, 0.0
        %vm626 = vcmp.ge.f32.partialorder %v458, 0.0
        %vm627 = vcmp.ge.f32.partialorder %v459, 0.0
        %vm628 = vcmp.ge.f32.partialorder %v460, 0.0
        %v629 = vsub.f32 0.0, %v613
        %v630 = vsub.f32 0.0, %v614
        %v631 = vsub.f32 0.0, %v615
        %v632 = vsub.f32 0.0, %v616
        %v633 = vsub.f32 0.0, %v617
        %v634 = vsub.f32 0.0, %v618
        %v635 = vsub.f32 0.0, %v619
        %v636 = vsub.f32 0.0, %v620
        %v637 = vsel %vm621, %v613, %v629
        %v638 = vsel %vm622, %v614, %v630
        %v639 = vsel %vm623, %v615, %v631
        %v640 = vsel %vm624, %v616, %v632
        %v641 = vsel %vm625, %v617, %v633
        %v642 = vsel %vm626, %v618, %v634
        %v643 = vsel %vm627, %v619, %v635
        %v644 = vsel %vm628, %v620, %v636
        %v645 = vadd.f32 %v637, 1.0
        %v646 = vadd.f32 %v638, 1.0
        %v647 = vadd.f32 %v639, 1.0
        %v648 = vadd.f32 %v640, 1.0
        %v649 = vadd.f32 %v641, 1.0
        %v650 = vadd.f32 %v642, 1.0
        %v651 = vadd.f32 %v643, 1.0
        %v652 = vadd.f32 %v644, 1.0
        %v653 = vmul.f32 %v445, %v645
        %v654 = vmul.f32 %v446, %v646
        %v655 = vmul.f32 %v447, %v647
        %v656 = vmul.f32 %v448, %v648
        %v657 = vmul.f32 %v449, %v649
        %v658 = vmul.f32 %v450, %v650
        %v659 = vmul.f32 %v451, %v651
        %v660 = vmul.f32 %v452, %v652
        %661 = vst [vmem:[%s205] sm:$0xff] %v653
        %662 = vst [vmem:[%s205 + $0x8] sm:$0xff] %v654
        %663 = vst [vmem:[%s205 + $0x10] sm:$0xff] %v655
        %664 = vst [vmem:[%s205 + $0x18] sm:$0xff] %v656
        %665 = vst [vmem:[%s205 + $0x20] sm:$0xff] %v657
        %666 = vst [vmem:[%s205 + $0x28] sm:$0xff] %v658
        %667 = vst [vmem:[%s205 + $0x30] sm:$0xff] %v659
        %668 = vst [vmem:[%s205 + $0x38] sm:$0xff] %v660
        %s669 = sand.u32 %s116, 1
        %s670 = scalar_lea.sflag [#allocation4], %s669
        %s671 = sand.u32 %s116, 1
        %s672 = smul.addr %s671, 64
        %s673 = scalar_lea.vmem [#allocation5], %s672
        // Predicated region
        $region41: #{tpu_custom_call.1} parent=35 // pred_check
          %p674 = pneg %p126
        $region42: #{tpu_custom_call.1} parent=35 // pred_check_branch
          %676 = sbr.rel (%p674) target = $region44
        $region43: #{tpu_custom_call.1} parent=35 // pred_region
          %s678 = ssub.s32 1024, 1024
          %679 = vsyncadd %s670, %s678
          %s680 = smul.addr %s19, 8
          %s681 = smul.addr %s680, 128
          %s682 = scalar_lea.hbm %s4, %s681
          %s683 = sshll.u32 %s673, 4
          %s684 = int_to_ptr.vmem [resolvable:$true] %s683
          %689 = dma.vmem_to_hbm [thread:$0]  %s684, 1024, %s682, %s670, 256, 256, 16
        $region44: #{tpu_custom_call.1} parent=35 // pred_fallthru
          _
      $region36: #{tpu_custom_call.1} parent=5 // pred_fallthru
        _
      %p690 = scmp.le.s32.totalorder 2, %s14
      // Predicated region
      $region45: #{tpu_custom_call.1} parent=5 // pred_check
        %p691 = pneg %p690
      $region46: #{tpu_custom_call.1} parent=5 // pred_check_branch
        %693 = sbr.rel (%p691) target = $region48
      $region47: #{tpu_custom_call.1} parent=5 // pred_region
        %s694 = ssub.s32 %s14, 2
        // Predicated region
        $region49: #{tpu_custom_call.1} parent=47 // pred_check
          %p695 = pneg %p132
        $region50: #{tpu_custom_call.1} parent=47 // pred_check_branch
          %697 = sbr.rel (%p695) target = $region52
        $region51: #{tpu_custom_call.1} parent=47 // pred_region
          %s698 = sand.u32 %s117, 1
          %s699 = scalar_lea.sflag [#allocation4], %s698
          %s700 = sand.u32 %s117, 1
          %s701 = smul.addr %s700, 64
          %s702 = scalar_lea.vmem [#allocation5], %s701
          %703 = dma.done %s699, 1024
        $region52: #{tpu_custom_call.1} parent=47 // pred_fallthru
          _
      $region48: #{tpu_custom_call.1} parent=5 // pred_fallthru
        _
    $region6: #{tpu_custom_call.1} parent=1 // loop_footer
      %s18 = sadd.s32 1, %s14
    $region7: #{tpu_custom_call.1} parent=1 // loop_footer_branch
      %13 = sbr.rel target = $region3
    $region8: #{tpu_custom_call.1} parent=1 // loop_exit
      _
    %704 = vsyncpa [#allocation3], 1
    %s705 = scalar_lea.sflag [#allocation3], 1
    %706 = vsyncpa %s705, 1
    %707 = vsyncpa [#allocation4], 1
    %s708 = scalar_lea.sflag [#allocation4], 1
    %709 = vsyncpa %s708, 1

</llo_original>
